<compile_context>
chip_gen: v6e
topology: v6e:2x2x1
jax: 0.10.0
libtpu: 0.0.40
codegen_flags: <defaults>
</compile_context>

<pallas_src>
import jax
import jax.numpy as jnp
from jax.experimental import pallas as pl
from jax.experimental.pallas import tpu as pltpu


# ----------------------------------------------------------------------------
# Pallas kernel: one recurrent DRQN head, one invocation per batch tile.
# ----------------------------------------------------------------------------
def _drqn_head_kernel(x_ref, h0_ref, w1_ref, b1_ref, wxh_ref, bh_ref,
                      whh_ref, wo_ref, bo_ref, q_ref, hout_ref):
    T, tb, D = x_ref.shape            # static trace-time ints

    # ---- Phase 1: batched, non-recurrent precompute over all T*tb rows ----
    #   Z = relu(X @ W1 + b1);  U = Z @ Wxh + bh        (biases folded here)
    x2d = x_ref[...].reshape(T * tb, D)                     # layout-preserving
    z = jnp.maximum(
        jnp.dot(x2d, w1_ref[...], preferred_element_type=jnp.float32)
        + b1_ref[...], 0.0)
    u = (jnp.dot(z, wxh_ref[...], preferred_element_type=jnp.float32)
         + bh_ref[...])                                     # (T*tb, Hp)

    # ---- Phase 2: minimal serial recurrence:  h = tanh(U[t] + h @ Whh) ----
    whh = whh_ref[...]                                      # hoisted load
    h = h0_ref[...]                                         # carry in vregs
    for t in range(T):   # T small & static -> fully unrolled, LLO-visible
        u_t = u[t * tb:(t + 1) * tb, :]                     # contiguous sublane slice
        h = jnp.tanh(u_t + jnp.dot(h, whh,
                                   preferred_element_type=jnp.float32))

    # ---- Outputs (both lane-dense: Ap and Hp are 128-multiples) ----
    q_ref[...] = (jnp.dot(h, wo_ref[...],
                          preferred_element_type=jnp.float32) + bo_ref[...])
    hout_ref[...] = h


def _drqn_head(params, x, h0, *, batch_tile=8):
    """Run one head. x: (B, T, D_in) batch-first, h0: (B, H)."""
    B, T, D = x.shape
    H = params["whh"].shape[0]
    A = params["wo"].shape[1]

    # ---- weight plumbing (touches only weights / tiny activation views) ----
    Hp = pl.cdiv(H, 128) * 128        # lane-dense hidden width
    Ap = pl.cdiv(A, 128) * 128        # lane-dense Q width
    # Zero padding is exact: padded Z cols = relu(0) = 0, padded h cols =
    # tanh(0) = 0 for every step, padded q cols = 0.
    w1  = jnp.pad(params["w1"],  ((0, 0),      (0, Hp - H)))
    b1  = jnp.pad(params["b1"],  ((0, 0),      (0, Hp - H)))
    wxh = jnp.pad(params["wxh"], ((0, Hp - H), (0, Hp - H)))
    bh  = jnp.pad(params["bh"],  ((0, 0),      (0, Hp - H)))
    whh = jnp.pad(params["whh"], ((0, Hp - H), (0, Hp - H)))
    wo  = jnp.pad(params["wo"],  ((0, Hp - H), (0, Ap - A)))
    bo  = jnp.pad(params["bo"],  ((0, 0),      (0, Ap - A)))
    h0p = jnp.pad(h0,            ((0, 0),      (0, Hp - H)))
    # TODO(synk): for realistic H (>=1024) cast the padded weights to bfloat16
    # here (accumulation stays f32 via preferred_element_type).

    # Time-major x so each U[t] in the kernel is a contiguous sublane block.
    x_tm = jnp.transpose(x, (1, 0, 2))                      # (T, B, D)

    # Batch tile: multiple of 8 sublanes; >=2 tiles when B grows (v7x 2 TCs).
    tb = batch_tile if (B >= batch_tile and B % batch_tile == 0) else B
    nb = B // tb

    full = lambda shape: pl.BlockSpec(shape, lambda i: (0,) * len(shape))

    q_pad, h_pad = pl.pallas_call(
        _drqn_head_kernel,
        out_shape=(
            jax.ShapeDtypeStruct((B, Ap), jnp.float32),     # lane-dense Q slab
            jax.ShapeDtypeStruct((B, Hp), jnp.float32),     # lane-dense hidden
        ),
        grid_spec=pltpu.PrefetchScalarGridSpec(
            num_scalar_prefetch=0,
            grid=(nb,),                                     # batch tiles only
            in_specs=[
                pl.BlockSpec((T, tb, D), lambda i: (0, i, 0)),  # x (time-major)
                pl.BlockSpec((tb, Hp),   lambda i: (i, 0)),     # h0
                full((D, Hp)),       # W1
                full((1, Hp)),       # b1
                full((Hp, Hp)),      # Wxh
                full((1, Hp)),       # bh
                full((Hp, Hp)),      # Whh
                full((Hp, Ap)),      # Wo (padded)
                full((1, Ap)),       # bo (padded)
            ],
            out_specs=(
                pl.BlockSpec((tb, Ap), lambda i: (i, 0)),
                pl.BlockSpec((tb, Hp), lambda i: (i, 0)),
            ),
        ),
        compiler_params=pltpu.CompilerParams(
            # Independent batch tiles -> shard across v7x TensorCores.
            dimension_semantics=("parallel",),
            # TODO(synk): at realistic H set vmem_limit_bytes here (v5e default
            # scoped limit is 16 MiB) and Buffered(1) on the weight specs.
        ),
    )(x_tm, h0p, w1, b1, wxh, bh, whh, wo, bo)

    return q_pad[:, :A], h_pad[:, :H]


# ----------------------------------------------------------------------------
# TwoHeadNet: forward(x, hidden, b) -> net1(x, hidden) if b else net2(x, hidden)
# ----------------------------------------------------------------------------
def two_head_net_forward(params1, params2, x, hidden=None, b=True):
    """x: (B, T, D_in) batch-first; hidden: (B, H) or None.

    `b` must be a static Python bool (same python-level dispatch as the
    original nn.Module); use lax.cond yourself for a traced switch.
    """
    B, _, _ = x.shape
    H = params1["whh"].shape[0]
    if hidden is None:
        hidden = jnp.zeros((B, H), jnp.float32)
    if b:
        return _drqn_head(params1, x, hidden)
    return _drqn_head(params2, x, hidden)


# ----------------------------------------------------------------------------
# Deterministic parameter construction (synthetic weights, no checkpoint load).
# ----------------------------------------------------------------------------
def _init_head_params(key, d_in, hidden, n_actions):
    ks = jax.random.split(key, 5)
    s = lambda fan_in: 1.0 / jnp.sqrt(jnp.float32(fan_in))
    return {
        "w1":  jax.random.normal(ks[0], (d_in, hidden), jnp.float32) * s(d_in),
        "b1":  jnp.zeros((1, hidden), jnp.float32),
        "wxh": jax.random.normal(ks[1], (hidden, hidden), jnp.float32) * s(hidden),
        "whh": jax.random.normal(ks[2], (hidden, hidden), jnp.float32) * s(hidden),
        "bh":  jnp.zeros((1, hidden), jnp.float32),
        "wo":  jax.random.normal(ks[3], (hidden, n_actions), jnp.float32) * s(hidden),
        "bo":  jnp.zeros((1, n_actions), jnp.float32),
    }


def _reference_head(params, x, h0):
    """Pure-JAX reference of one head for correctness checking."""
    def step(h, x_t):
        z = jnp.maximum(x_t @ params["w1"] + params["b1"], 0.0)
        h = jnp.tanh(z @ params["wxh"] + h @ params["whh"] + params["bh"])
        return h, None
    h, _ = jax.lax.scan(step, h0, jnp.transpose(x, (1, 0, 2)))
    q = h @ params["wo"] + params["bo"]
    return q, h


if __name__ == "__main__":
    # batch=8 fills the sublane dimension; all shapes small and deterministic.
    B, T, D_IN, HID, N_ACT = 8, 8, 16, 32, 4

    key = jax.random.PRNGKey(0)
    k_p1, k_p2, k_x, k_h = jax.random.split(key, 4)

    params1 = _init_head_params(k_p1, D_IN, HID, N_ACT)
    params2 = _init_head_params(k_p2, D_IN, HID, N_ACT)

    x = jax.random.normal(k_x, (B, T, D_IN), jnp.float32)
    hidden = jax.random.normal(k_h, (B, HID), jnp.float32)

    # b=True -> net1 ; b=False -> net2
    q1, h1 = two_head_net_forward(params1, params2, x, hidden, b=True)
    q2, h2 = two_head_net_forward(params1, params2, x, hidden, b=False)
    jax.block_until_ready((q1, h1, q2, h2))

    # Silent correctness check against a pure-JAX reference.
    rq1, rh1 = _reference_head(params1, x, hidden)
    rq2, rh2 = _reference_head(params2, x, hidden)
    assert jnp.allclose(q1, rq1, atol=1e-4, rtol=1e-4)
    assert jnp.allclose(h1, rh1, atol=1e-4, rtol=1e-4)
    assert jnp.allclose(q2, rq2, atol=1e-4, rtol=1e-4)
    assert jnp.allclose(h2, rh2, atol=1e-4, rtol=1e-4)

    print("KERNEL_OK")
</pallas_src>

<mosaic_0001>
module attributes {stable_mosaic.version = 11 : i64} {
  func.func @_drqn_head_kernel(%arg0: i32, %arg1: memref<8x8x16xf32, #tpu.memory_space<vmem>>, %arg2: memref<8x128xf32, #tpu.memory_space<vmem>>, %arg3: memref<16x128xf32, #tpu.memory_space<vmem>>, %arg4: memref<1x128xf32, #tpu.memory_space<vmem>>, %arg5: memref<128x128xf32, #tpu.memory_space<vmem>>, %arg6: memref<1x128xf32, #tpu.memory_space<vmem>>, %arg7: memref<128x128xf32, #tpu.memory_space<vmem>>, %arg8: memref<128x128xf32, #tpu.memory_space<vmem>>, %arg9: memref<1x128xf32, #tpu.memory_space<vmem>>, %arg10: memref<8x128xf32, #tpu.memory_space<vmem>>, %arg11: memref<8x128xf32, #tpu.memory_space<vmem>>) attributes {dimension_semantics = [#tpu.dimension_semantics<parallel>], iteration_bounds = array<i64: 1>, scalar_prefetch = 0 : i64, scratch_operands = 0 : i64, tpu.core_type = #tpu.core_type<tc>, window_params = [{transform_indices = @transform_0, window_bounds = array<i64: 8, 8, 16>}, {transform_indices = @transform_1, window_bounds = array<i64: 8, 128>}, {pipeline_mode = #tpu.pipeline_mode<synchronous>, transform_indices = @transform_2, window_bounds = array<i64: 16, 128>}, {pipeline_mode = #tpu.pipeline_mode<synchronous>, transform_indices = @transform_3, window_bounds = array<i64: 1, 128>}, {pipeline_mode = #tpu.pipeline_mode<synchronous>, transform_indices = @transform_4, window_bounds = array<i64: 128, 128>}, {pipeline_mode = #tpu.pipeline_mode<synchronous>, transform_indices = @transform_5, window_bounds = array<i64: 1, 128>}, {pipeline_mode = #tpu.pipeline_mode<synchronous>, transform_indices = @transform_6, window_bounds = array<i64: 128, 128>}, {pipeline_mode = #tpu.pipeline_mode<synchronous>, transform_indices = @transform_7, window_bounds = array<i64: 128, 128>}, {pipeline_mode = #tpu.pipeline_mode<synchronous>, transform_indices = @transform_8, window_bounds = array<i64: 1, 128>}, {transform_indices = @transform_9, window_bounds = array<i64: 8, 128>}, {transform_indices = @transform_10, window_bounds = array<i64: 8, 128>}]} {
    %c0 = arith.constant 0 : index
    %c0_0 = arith.constant 0 : index
    %c0_1 = arith.constant 0 : index
    %0 = vector.load %arg1[%c0, %c0_0, %c0_1] : memref<8x8x16xf32, #tpu.memory_space<vmem>>, vector<8x8x16xf32>
    %1 = vector.shape_cast %0 : vector<8x8x16xf32> to vector<64x16xf32>
    %c0_2 = arith.constant 0 : index
    %c0_3 = arith.constant 0 : index
    %2 = vector.load %arg3[%c0_2, %c0_3] : memref<16x128xf32, #tpu.memory_space<vmem>>, vector<16x128xf32>
    %cst = arith.constant dense<0.000000e+00> : vector<64x128xf32>
    %3 = tpu.matmul %1, %2, %cst {dimension_numbers = #tpu.dot_dimension_numbers<[1], [0], [0], [1], [0, 0, 1, 1], [], []>} : vector<64x16xf32>, vector<16x128xf32>, vector<64x128xf32> -> vector<64x128xf32>
    %c0_4 = arith.constant 0 : index
    %c0_5 = arith.constant 0 : index
    %4 = vector.load %arg4[%c0_4, %c0_5] : memref<1x128xf32, #tpu.memory_space<vmem>>, vector<1x128xf32>
    %5 = vector.broadcast %4 : vector<1x128xf32> to vector<64x128xf32>
    %6 = arith.addf %3, %5 : vector<64x128xf32>
    %cst_6 = arith.constant 0.000000e+00 : f32
    %7 = vector.broadcast %cst_6 : f32 to vector<64x128xf32>
    %8 = arith.maximumf %6, %7 : vector<64x128xf32>
    %c0_7 = arith.constant 0 : index
    %c0_8 = arith.constant 0 : index
    %9 = vector.load %arg5[%c0_7, %c0_8] : memref<128x128xf32, #tpu.memory_space<vmem>>, vector<128x128xf32>
    %cst_9 = arith.constant dense<0.000000e+00> : vector<64x128xf32>
    %10 = tpu.matmul %8, %9, %cst_9 {dimension_numbers = #tpu.dot_dimension_numbers<[1], [0], [0], [1], [0, 0, 1, 1], [], []>} : vector<64x128xf32>, vector<128x128xf32>, vector<64x128xf32> -> vector<64x128xf32>
    %c0_10 = arith.constant 0 : index
    %c0_11 = arith.constant 0 : index
    %11 = vector.load %arg6[%c0_10, %c0_11] : memref<1x128xf32, #tpu.memory_space<vmem>>, vector<1x128xf32>
    %12 = vector.broadcast %11 : vector<1x128xf32> to vector<64x128xf32>
    %13 = arith.addf %10, %12 : vector<64x128xf32>
    %c0_12 = arith.constant 0 : index
    %c0_13 = arith.constant 0 : index
    %14 = vector.load %arg7[%c0_12, %c0_13] : memref<128x128xf32, #tpu.memory_space<vmem>>, vector<128x128xf32>
    %c0_14 = arith.constant 0 : index
    %c0_15 = arith.constant 0 : index
    %15 = vector.load %arg2[%c0_14, %c0_15] : memref<8x128xf32, #tpu.memory_space<vmem>>, vector<8x128xf32>
    %16 = vector.extract_strided_slice %13 {offsets = [0, 0], sizes = [8, 128], strides = [1, 1]} : vector<64x128xf32> to vector<8x128xf32>
    %cst_16 = arith.constant dense<0.000000e+00> : vector<8x128xf32>
    %17 = tpu.matmul %15, %14, %cst_16 {dimension_numbers = #tpu.dot_dimension_numbers<[1], [0], [0], [1], [0, 0, 1, 1], [], []>} : vector<8x128xf32>, vector<128x128xf32>, vector<8x128xf32> -> vector<8x128xf32>
    %18 = arith.addf %16, %17 : vector<8x128xf32>
    %19 = math.tanh %18 : vector<8x128xf32>
    %20 = vector.extract_strided_slice %13 {offsets = [8, 0], sizes = [8, 128], strides = [1, 1]} : vector<64x128xf32> to vector<8x128xf32>
    %cst_17 = arith.constant dense<0.000000e+00> : vector<8x128xf32>
    %21 = tpu.matmul %19, %14, %cst_17 {dimension_numbers = #tpu.dot_dimension_numbers<[1], [0], [0], [1], [0, 0, 1, 1], [], []>} : vector<8x128xf32>, vector<128x128xf32>, vector<8x128xf32> -> vector<8x128xf32>
    %22 = arith.addf %20, %21 : vector<8x128xf32>
    %23 = math.tanh %22 : vector<8x128xf32>
    %24 = vector.extract_strided_slice %13 {offsets = [16, 0], sizes = [8, 128], strides = [1, 1]} : vector<64x128xf32> to vector<8x128xf32>
    %cst_18 = arith.constant dense<0.000000e+00> : vector<8x128xf32>
    %25 = tpu.matmul %23, %14, %cst_18 {dimension_numbers = #tpu.dot_dimension_numbers<[1], [0], [0], [1], [0, 0, 1, 1], [], []>} : vector<8x128xf32>, vector<128x128xf32>, vector<8x128xf32> -> vector<8x128xf32>
    %26 = arith.addf %24, %25 : vector<8x128xf32>
    %27 = math.tanh %26 : vector<8x128xf32>
    %28 = vector.extract_strided_slice %13 {offsets = [24, 0], sizes = [8, 128], strides = [1, 1]} : vector<64x128xf32> to vector<8x128xf32>
    %cst_19 = arith.constant dense<0.000000e+00> : vector<8x128xf32>
    %29 = tpu.matmul %27, %14, %cst_19 {dimension_numbers = #tpu.dot_dimension_numbers<[1], [0], [0], [1], [0, 0, 1, 1], [], []>} : vector<8x128xf32>, vector<128x128xf32>, vector<8x128xf32> -> vector<8x128xf32>
    %30 = arith.addf %28, %29 : vector<8x128xf32>
    %31 = math.tanh %30 : vector<8x128xf32>
    %32 = vector.extract_strided_slice %13 {offsets = [32, 0], sizes = [8, 128], strides = [1, 1]} : vector<64x128xf32> to vector<8x128xf32>
    %cst_20 = arith.constant dense<0.000000e+00> : vector<8x128xf32>
    %33 = tpu.matmul %31, %14, %cst_20 {dimension_numbers = #tpu.dot_dimension_numbers<[1], [0], [0], [1], [0, 0, 1, 1], [], []>} : vector<8x128xf32>, vector<128x128xf32>, vector<8x128xf32> -> vector<8x128xf32>
    %34 = arith.addf %32, %33 : vector<8x128xf32>
    %35 = math.tanh %34 : vector<8x128xf32>
    %36 = vector.extract_strided_slice %13 {offsets = [40, 0], sizes = [8, 128], strides = [1, 1]} : vector<64x128xf32> to vector<8x128xf32>
    %cst_21 = arith.constant dense<0.000000e+00> : vector<8x128xf32>
    %37 = tpu.matmul %35, %14, %cst_21 {dimension_numbers = #tpu.dot_dimension_numbers<[1], [0], [0], [1], [0, 0, 1, 1], [], []>} : vector<8x128xf32>, vector<128x128xf32>, vector<8x128xf32> -> vector<8x128xf32>
    %38 = arith.addf %36, %37 : vector<8x128xf32>
    %39 = math.tanh %38 : vector<8x128xf32>
    %40 = vector.extract_strided_slice %13 {offsets = [48, 0], sizes = [8, 128], strides = [1, 1]} : vector<64x128xf32> to vector<8x128xf32>
    %cst_22 = arith.constant dense<0.000000e+00> : vector<8x128xf32>
    %41 = tpu.matmul %39, %14, %cst_22 {dimension_numbers = #tpu.dot_dimension_numbers<[1], [0], [0], [1], [0, 0, 1, 1], [], []>} : vector<8x128xf32>, vector<128x128xf32>, vector<8x128xf32> -> vector<8x128xf32>
    %42 = arith.addf %40, %41 : vector<8x128xf32>
    %43 = math.tanh %42 : vector<8x128xf32>
    %44 = vector.extract_strided_slice %13 {offsets = [56, 0], sizes = [8, 128], strides = [1, 1]} : vector<64x128xf32> to vector<8x128xf32>
    %cst_23 = arith.constant dense<0.000000e+00> : vector<8x128xf32>
    %45 = tpu.matmul %43, %14, %cst_23 {dimension_numbers = #tpu.dot_dimension_numbers<[1], [0], [0], [1], [0, 0, 1, 1], [], []>} : vector<8x128xf32>, vector<128x128xf32>, vector<8x128xf32> -> vector<8x128xf32>
    %46 = arith.addf %44, %45 : vector<8x128xf32>
    %47 = math.tanh %46 : vector<8x128xf32>
    %c0_24 = arith.constant 0 : index
    %c0_25 = arith.constant 0 : index
    %48 = vector.load %arg8[%c0_24, %c0_25] : memref<128x128xf32, #tpu.memory_space<vmem>>, vector<128x128xf32>
    %cst_26 = arith.constant dense<0.000000e+00> : vector<8x128xf32>
    %49 = tpu.matmul %47, %48, %cst_26 {dimension_numbers = #tpu.dot_dimension_numbers<[1], [0], [0], [1], [0, 0, 1, 1], [], []>} : vector<8x128xf32>, vector<128x128xf32>, vector<8x128xf32> -> vector<8x128xf32>
    %c0_27 = arith.constant 0 : index
    %c0_28 = arith.constant 0 : index
    %50 = vector.load %arg9[%c0_27, %c0_28] : memref<1x128xf32, #tpu.memory_space<vmem>>, vector<1x128xf32>
    %51 = vector.broadcast %50 : vector<1x128xf32> to vector<8x128xf32>
    %52 = arith.addf %49, %51 : vector<8x128xf32>
    %c0_29 = arith.constant 0 : index
    %c0_30 = arith.constant 0 : index
    %53 = vector.load %arg10[%c0_29, %c0_30] : memref<8x128xf32, #tpu.memory_space<vmem>>, vector<8x128xf32>
    tpu.vector_store %arg10[%c0_29, %c0_30], %52 {strides = array<i32>} : memref<8x128xf32, #tpu.memory_space<vmem>>, vector<8x128xf32>,
    %c0_31 = arith.constant 0 : index
    %c0_32 = arith.constant 0 : index
    %54 = vector.load %arg11[%c0_31, %c0_32] : memref<8x128xf32, #tpu.memory_space<vmem>>, vector<8x128xf32>
    tpu.vector_store %arg11[%c0_31, %c0_32], %47 {strides = array<i32>} : memref<8x128xf32, #tpu.memory_space<vmem>>, vector<8x128xf32>,
    return
  }
  func.func @transform_0(%arg0: i32) -> (i32, i32, i32) {
    %c0_i32 = arith.constant 0 : i32
    %c0_i32_0 = arith.constant 0 : i32
    %c0_i32_1 = arith.constant 0 : i32
    return %c0_i32, %arg0, %c0_i32_0 : i32, i32, i32
  }
  func.func @transform_1(%arg0: i32) -> (i32, i32) {
    %c0_i32 = arith.constant 0 : i32
    %c0_i32_0 = arith.constant 0 : i32
    return %arg0, %c0_i32 : i32, i32
  }
  func.func @transform_2(%arg0: i32) -> (i32, i32) {
    %c0_i32 = arith.constant 0 : i32
    %c0_i32_0 = arith.constant 0 : i32
    %c0_i32_1 = arith.constant 0 : i32
    return %c0_i32, %c0_i32_0 : i32, i32
  }
  func.func @transform_3(%arg0: i32) -> (i32, i32) {
    %c0_i32 = arith.constant 0 : i32
    %c0_i32_0 = arith.constant 0 : i32
    %c0_i32_1 = arith.constant 0 : i32
    return %c0_i32, %c0_i32_0 : i32, i32
  }
  func.func @transform_4(%arg0: i32) -> (i32, i32) {
    %c0_i32 = arith.constant 0 : i32
    %c0_i32_0 = arith.constant 0 : i32
    %c0_i32_1 = arith.constant 0 : i32
    return %c0_i32, %c0_i32_0 : i32, i32
  }
  func.func @transform_5(%arg0: i32) -> (i32, i32) {
    %c0_i32 = arith.constant 0 : i32
    %c0_i32_0 = arith.constant 0 : i32
    %c0_i32_1 = arith.constant 0 : i32
    return %c0_i32, %c0_i32_0 : i32, i32
  }
  func.func @transform_6(%arg0: i32) -> (i32, i32) {
    %c0_i32 = arith.constant 0 : i32
    %c0_i32_0 = arith.constant 0 : i32
    %c0_i32_1 = arith.constant 0 : i32
    return %c0_i32, %c0_i32_0 : i32, i32
  }
  func.func @transform_7(%arg0: i32) -> (i32, i32) {
    %c0_i32 = arith.constant 0 : i32
    %c0_i32_0 = arith.constant 0 : i32
    %c0_i32_1 = arith.constant 0 : i32
    return %c0_i32, %c0_i32_0 : i32, i32
  }
  func.func @transform_8(%arg0: i32) -> (i32, i32) {
    %c0_i32 = arith.constant 0 : i32
    %c0_i32_0 = arith.constant 0 : i32
    %c0_i32_1 = arith.constant 0 : i32
    return %c0_i32, %c0_i32_0 : i32, i32
  }
  func.func @transform_9(%arg0: i32) -> (i32, i32) {
    %c0_i32 = arith.constant 0 : i32
    %c0_i32_0 = arith.constant 0 : i32
    return %arg0, %c0_i32 : i32, i32
  }
  func.func @transform_10(%arg0: i32) -> (i32, i32) {
    %c0_i32 = arith.constant 0 : i32
    %c0_i32_0 = arith.constant 0 : i32
    return %arg0, %c0_i32 : i32, i32
  }
}

</mosaic_0001>

<llo_original>
// kernel: tpu_custom_call.1
$region0: #{tpu_custom_call.1}
  #allocation0 [shape = 'u32[]', space=smem, size = 0x4, offset = 0x4, fixed_abs, tag = 'smem constant byte address 0x4 - core index']
  #allocation1 [shape = 'u32[144,128]{1,0:T(1,128)}', space=vmem, size = 0x12000, scoped, tag = 'internal scratch']
  %s0 = inlined_call_operand.hbm [shape: f32[8,8,16], index: 0, kind: input, shape index: {}]
  %s1 = inlined_call_operand.hbm [shape: f32[8,128], index: 1, kind: input, shape index: {}]
  %s2 = inlined_call_operand.hbm [shape: f32[16,128], index: 2, kind: input, shape index: {}]
  %s3 = inlined_call_operand.vmem [shape: f32[1,128], index: 3, kind: input, shape index: {}]
  %s4 = inlined_call_operand.hbm [shape: f32[128,128], index: 4, kind: input, shape index: {}]
  %s5 = inlined_call_operand.vmem [shape: f32[1,128], index: 5, kind: input, shape index: {}]
  %s6 = inlined_call_operand.hbm [shape: f32[128,128], index: 6, kind: input, shape index: {}]
  %s7 = inlined_call_operand.hbm [shape: f32[128,128], index: 7, kind: input, shape index: {}]
  %s8 = inlined_call_operand.vmem [shape: f32[1,128], index: 8, kind: input, shape index: {}]
  %s9 = inlined_call_operand.hbm [shape: f32[8,128], index: 9, kind: output, shape index: {0}]
  %s10 = inlined_call_operand.hbm [shape: f32[8,128], index: 10, kind: output, shape index: {1}]
  %11 = xla_tuple %s9, %s10
  %s12 = sld [smem:[#allocation0]]
  $region78: #{tpu_custom_call.1} parent=0
    _
  %s14 = ssub.s32 1, %s12
  %s15 = scalar_select 0, %s14, %s12
  $region1: #{tpu_custom_call.1} parent=0
    #allocation2 [shape = 'u8[32768]{0}', space=vmem, size = 0x8000, scoped, tag = 'input window, operand 0, single buffered']
    #allocation3 [shape = 's32[1]{0}', space=sflag, size = 0x4, scoped, tag = 'scoped memory for tpu_custom_call.1']
    #allocation4 [shape = 's32[1]{0}', space=sflag, size = 0x4, scoped, tag = 'scoped memory for tpu_custom_call.1']
    #allocation5 [shape = 'u8[4096]{0}', space=vmem, size = 0x1000, scoped, tag = 'input window, operand 1, single buffered']
    #allocation6 [shape = 's32[1]{0}', space=sflag, size = 0x4, scoped, tag = 'scoped memory for tpu_custom_call.1']
    #allocation7 [shape = 'u8[8192]{0}', space=vmem, size = 0x2000, scoped, tag = 'input window, operand 2, single buffered']
    #allocation8 [shape = 'u8[65536]{0}', space=vmem, size = 0x10000, scoped, tag = 'input window, operand 4, single buffered']
    #allocation9 [shape = 's32[1]{0}', space=sflag, size = 0x4, scoped, tag = 'scoped memory for tpu_custom_call.1']
    #allocation10 [shape = 'u8[65536]{0}', space=vmem, size = 0x10000, scoped, tag = 'input window, operand 6, single buffered']
    #allocation11 [shape = 'u8[65536]{0}', space=vmem, size = 0x10000, scoped, tag = 'input window, operand 7, single buffered']
    #allocation12 [shape = 's32[1]{0}', space=sflag, size = 0x4, scoped, tag = 'scoped memory for tpu_custom_call.1']
    #allocation13 [shape = 'u8[4096]{0}', space=vmem, size = 0x1000, scoped, tag = 'output window, operand 0, single buffered']
    #allocation14 [shape = 'u8[4096]{0}', space=vmem, size = 0x1000, scoped, tag = 'output window, operand 1, single buffered']
    #allocation15 [shape = 's32[1]{0}', space=sflag, size = 0x4, scoped, tag = 'scoped memory for tpu_custom_call.1']
    %16 = vsyncpa [#allocation3], 0
    %17 = vsyncpa [#allocation6], 0
    %18 = vsyncpa [#allocation9], 0
    %19 = vsyncpa [#allocation12], 0
    %20 = vsyncpa [#allocation4], 0
    %21 = vsyncpa [#allocation15], 0
    // Predicated region
    $region2: #{tpu_custom_call.1} parent=1 // pred_check
      _
    $region3: #{tpu_custom_call.1} parent=1 // pred_check_branch
      %23 = sbr.rel (0) target = $region5
    $region4: #{tpu_custom_call.1} parent=1 // pred_region
      %s25 = ssub.s32 1024, 1024
      %26 = vsyncadd [#allocation3], %s25
      %s27 = sshll.u32 [#allocation2], 4
      %s28 = int_to_ptr.vmem [resolvable:$true] %s27
      %33 = dma.hbm_to_vmem [thread:$0]  %s0, 1024, %s28, [#allocation3], 128, 128, 8
    $region5: #{tpu_custom_call.1} parent=1 // pred_fallthru
      _
    // Predicated region
    $region6: #{tpu_custom_call.1} parent=1 // pred_check
      _
    $region7: #{tpu_custom_call.1} parent=1 // pred_check_branch
      %35 = sbr.rel (0) target = $region9
    $region8: #{tpu_custom_call.1} parent=1 // pred_region
      %s37 = ssub.s32 128, 128
      %38 = vsyncadd [#allocation6], %s37
      %s40 = sshll.u32 [#allocation5], 4
      %s41 = int_to_ptr.vmem [resolvable:$true] %s40
      %43 = dma.hbm_to_vmem [thread:$0]  %s1, 128, %s41, [#allocation6]
    $region9: #{tpu_custom_call.1} parent=1 // pred_fallthru
      _
    // Predicated region
    $region10: #{tpu_custom_call.1} parent=1 // pred_check
      _
    $region11: #{tpu_custom_call.1} parent=1 // pred_check_branch
      %45 = sbr.rel (0) target = $region13
    $region12: #{tpu_custom_call.1} parent=1 // pred_region
      %s47 = ssub.s32 256, 256
      %48 = vsyncadd [#allocation6], %s47
      %s49 = sshll.u32 [#allocation7], 4
      %s50 = int_to_ptr.vmem [resolvable:$true] %s49
      %55 = dma.hbm_to_vmem [thread:$0]  %s2, 256, %s50, [#allocation6], 128, 128, 8
    $region13: #{tpu_custom_call.1} parent=1 // pred_fallthru
      _
    // Predicated region
    $region14: #{tpu_custom_call.1} parent=1 // pred_check
      _
    $region15: #{tpu_custom_call.1} parent=1 // pred_check_branch
      %57 = sbr.rel (0) target = $region17
    $region16: #{tpu_custom_call.1} parent=1 // pred_region
      _
    $region17: #{tpu_custom_call.1} parent=1 // pred_fallthru
      _
    // Predicated region
    $region18: #{tpu_custom_call.1} parent=1 // pred_check
      _
    $region19: #{tpu_custom_call.1} parent=1 // pred_check_branch
      %59 = sbr.rel (0) target = $region21
    $region20: #{tpu_custom_call.1} parent=1 // pred_region
      %s61 = ssub.s32 2048, 2048
      %62 = vsyncadd [#allocation9], %s61
      %s63 = sshll.u32 [#allocation8], 4
      %s64 = int_to_ptr.vmem [resolvable:$true] %s63
      %69 = dma.hbm_to_vmem [thread:$0]  %s4, 2048, %s64, [#allocation9], 128, 128, 8
    $region21: #{tpu_custom_call.1} parent=1 // pred_fallthru
      _
    // Predicated region
    $region22: #{tpu_custom_call.1} parent=1 // pred_check
      _
    $region23: #{tpu_custom_call.1} parent=1 // pred_check_branch
      %71 = sbr.rel (0) target = $region25
    $region24: #{tpu_custom_call.1} parent=1 // pred_region
      _
    $region25: #{tpu_custom_call.1} parent=1 // pred_fallthru
      _
    // Predicated region
    $region26: #{tpu_custom_call.1} parent=1 // pred_check
      _
    $region27: #{tpu_custom_call.1} parent=1 // pred_check_branch
      %73 = sbr.rel (0) target = $region29
    $region28: #{tpu_custom_call.1} parent=1 // pred_region
      %s75 = ssub.s32 2048, 2048
      %76 = vsyncadd [#allocation9], %s75
      %s77 = sshll.u32 [#allocation10], 4
      %s78 = int_to_ptr.vmem [resolvable:$true] %s77
      %83 = dma.hbm_to_vmem [thread:$0]  %s6, 2048, %s78, [#allocation9], 128, 128, 8
    $region29: #{tpu_custom_call.1} parent=1 // pred_fallthru
      _
    // Predicated region
    $region30: #{tpu_custom_call.1} parent=1 // pred_check
      _
    $region31: #{tpu_custom_call.1} parent=1 // pred_check_branch
      %85 = sbr.rel (0) target = $region33
    $region32: #{tpu_custom_call.1} parent=1 // pred_region
      %s87 = ssub.s32 2048, 2048
      %88 = vsyncadd [#allocation12], %s87
      %s89 = sshll.u32 [#allocation11], 4
      %s90 = int_to_ptr.vmem [resolvable:$true] %s89
      %95 = dma.hbm_to_vmem [thread:$0]  %s7, 2048, %s90, [#allocation12], 128, 128, 8
    $region33: #{tpu_custom_call.1} parent=1 // pred_fallthru
      _
    // Predicated region
    $region34: #{tpu_custom_call.1} parent=1 // pred_check
      _
    $region35: #{tpu_custom_call.1} parent=1 // pred_check_branch
      %97 = sbr.rel (0) target = $region37
    $region36: #{tpu_custom_call.1} parent=1 // pred_region
      _
    $region37: #{tpu_custom_call.1} parent=1 // pred_fallthru
      _
    // Predicated region
    $region38: #{tpu_custom_call.1} parent=1 // pred_check
      _
    $region39: #{tpu_custom_call.1} parent=1 // pred_check_branch
      %99 = sbr.rel (0) target = $region41
    $region40: #{tpu_custom_call.1} parent=1 // pred_region
      %100 = dma.done [#allocation3], 1024
    $region41: #{tpu_custom_call.1} parent=1 // pred_fallthru
      _
    // Predicated region
    $region42: #{tpu_custom_call.1} parent=1 // pred_check
      _
    $region43: #{tpu_custom_call.1} parent=1 // pred_check_branch
      %102 = sbr.rel (0) target = $region45
    $region44: #{tpu_custom_call.1} parent=1 // pred_region
      %103 = dma.done [#allocation6], 128
    $region45: #{tpu_custom_call.1} parent=1 // pred_fallthru
      _
    // Predicated region
    $region46: #{tpu_custom_call.1} parent=1 // pred_check
      _
    $region47: #{tpu_custom_call.1} parent=1 // pred_check_branch
      %105 = sbr.rel (0) target = $region49
    $region48: #{tpu_custom_call.1} parent=1 // pred_region
      %106 = dma.done [#allocation6], 256
    $region49: #{tpu_custom_call.1} parent=1 // pred_fallthru
      _
    // Predicated region
    $region50: #{tpu_custom_call.1} parent=1 // pred_check
      _
    $region51: #{tpu_custom_call.1} parent=1 // pred_check_branch
      %108 = sbr.rel (0) target = $region53
    $region52: #{tpu_custom_call.1} parent=1 // pred_region
      %109 = dma.done [#allocation9], 2048
    $region53: #{tpu_custom_call.1} parent=1 // pred_fallthru
      _
    // Predicated region
    $region54: #{tpu_custom_call.1} parent=1 // pred_check
      _
    $region55: #{tpu_custom_call.1} parent=1 // pred_check_branch
      %111 = sbr.rel (0) target = $region57
    $region56: #{tpu_custom_call.1} parent=1 // pred_region
      %112 = dma.done [#allocation9], 2048
    $region57: #{tpu_custom_call.1} parent=1 // pred_fallthru
      _
    // Predicated region
    $region58: #{tpu_custom_call.1} parent=1 // pred_check
      _
    $region59: #{tpu_custom_call.1} parent=1 // pred_check_branch
      %114 = sbr.rel (0) target = $region61
    $region60: #{tpu_custom_call.1} parent=1 // pred_region
      %115 = dma.done [#allocation12], 2048
    $region61: #{tpu_custom_call.1} parent=1 // pred_fallthru
      _
    %v116 = vld [vmem:[#allocation2] sm:$0xff]
    %v117 = vld [vmem:[#allocation2 + $0x8] sm:$0xff]
    %v118 = vld [vmem:[#allocation2 + $0x10] sm:$0xff]
    %v119 = vld [vmem:[#allocation2 + $0x18] sm:$0xff]
    %v120 = vld [vmem:[#allocation2 + $0x20] sm:$0xff]
    %v121 = vld [vmem:[#allocation2 + $0x28] sm:$0xff]
    %v122 = vld [vmem:[#allocation2 + $0x30] sm:$0xff]
    %v123 = vld [vmem:[#allocation2 + $0x38] sm:$0xff]
    %v124 = vld [vmem:[#allocation7] sm:$0xff]
    %v125 = vld [vmem:[#allocation7 + $0x8] sm:$0xff]
    %v126 = vld [vmem:[%s3] sm:$0x1]
    %v128 = vlaneseq
    %v129 = vshrl.u32 %v128, 7
    %v130 = vsub.s32 0, %v129
    %v131 = vrot.slane %v126, %v130
    %vm133 = vcmask 130048
    %v135 = vsel %vm133, %v116, 0
    %v138 = vsel %vm133, %v117, 0
    %v141 = vsel %vm133, %v118, 0
    %v144 = vsel %vm133, %v119, 0
    %v147 = vsel %vm133, %v120, 0
    %v150 = vsel %vm133, %v121, 0
    %v153 = vsel %vm133, %v122, 0
    %v156 = vsel %vm133, %v123, 0
    %158 = vmatprep.subr.mxu0 0.0
    %159 = vmatpush1.msra.mxu0 0.0
    %160 = vmatprep.subr.mxu0 0.0
    %161 = vmatpush1.msra.mxu0 0.0
    %162 = vmatprep.subr.mxu0 0.0
    %163 = vmatpush1.msra.mxu0 0.0
    %164 = vmatprep.subr.mxu0 0.0
    %165 = vmatpush1.msra.mxu0 0.0
    %166 = vmatprep.subr.mxu0 0.0
    %167 = vmatpush1.msra.mxu0 0.0
    %168 = vmatprep.subr.mxu0 0.0
    %169 = vmatpush1.msra.mxu0 0.0
    %170 = vmatprep.subr.mxu0 0.0
    %171 = vmatpush1.msra.mxu0 0.0
    %172 = vmatprep.subr.mxu0 0.0
    %173 = vmatpush1.msra.mxu0 0.0
    %174 = vmatprep.subr.mxu0 0.0
    %175 = vmatpush1.msra.mxu0 0.0
    %176 = vmatprep.subr.mxu0 0.0
    %177 = vmatpush1.msra.mxu0 0.0
    %178 = vmatprep.subr.mxu0 0.0
    %179 = vmatpush1.msra.mxu0 0.0
    %180 = vmatprep.subr.mxu0 0.0
    %181 = vmatpush1.msra.mxu0 0.0
    %182 = vmatprep.subr.mxu0 0.0
    %183 = vmatpush1.msra.mxu0 0.0
    %184 = vmatprep.subr.mxu0 0.0
    %185 = vmatpush1.msra.mxu0 0.0
    %186 = vmatprep.subr.mxu0 0.0
    %187 = vmatpush1.msra.mxu0 %v125
    %188 = vmatprep.subr.mxu0 0.0
    %189 = vmatpush1.msra.mxu0 %v124
    %190 = vmatprep.subr.mxu0 0.0
    %191 = vmatpush2.msra.mxu0 0.0
    %192 = vmatprep.subr.mxu0 0.0
    %193 = vmatpush2.msra.mxu0 0.0
    %194 = vmatprep.subr.mxu0 0.0
    %195 = vmatpush2.msra.mxu0 0.0
    %196 = vmatprep.subr.mxu0 0.0
    %197 = vmatpush2.msra.mxu0 0.0
    %198 = vmatprep.subr.mxu0 0.0
    %199 = vmatpush2.msra.mxu0 0.0
    %200 = vmatprep.subr.mxu0 0.0
    %201 = vmatpush2.msra.mxu0 0.0
    %202 = vmatprep.subr.mxu0 0.0
    %203 = vmatpush2.msra.mxu0 0.0
    %204 = vmatprep.subr.mxu0 0.0
    %205 = vmatpush2.msra.mxu0 0.0
    %206 = vmatprep.subr.mxu0 0.0
    %207 = vmatpush2.msra.mxu0 0.0
    %208 = vmatprep.subr.mxu0 0.0
    %209 = vmatpush2.msra.mxu0 0.0
    %210 = vmatprep.subr.mxu0 0.0
    %211 = vmatpush2.msra.mxu0 0.0
    %212 = vmatprep.subr.mxu0 0.0
    %213 = vmatpush2.msra.mxu0 0.0
    %214 = vmatprep.subr.mxu0 0.0
    %215 = vmatpush2.msra.mxu0 0.0
    %216 = vmatprep.subr.mxu0 0.0
    %217 = vmatpush2.msra.mxu0 0.0
    %218 = vmatprep.subr.mxu0 0.0
    %219 = vmatpush2.msra.mxu0 0.0
    %220 = vmatprep.subr.mxu0 0.0
    %221 = vmatpush2.msra.mxu0 0.0
    %222 = vmatprep.mubr.f32.mxu0 0.0
    %223 = vmatmul.mubr.f32.gmra.mxu0 %v135
    %v224 = vpop.f32.mrf.mxu0
    %v225 = vadd.f32 %v131, %v224
    %v226 = vpop.f32.mrf.mxu0
    %227 = vmatprep.mubr.f32.mxu0 0.0
    %228 = vmatmul.mubr.f32.gmra.mxu0 %v138
    %v229 = vpop.f32.mrf.mxu0
    %v230 = vadd.f32 %v131, %v229
    %v231 = vpop.f32.mrf.mxu0
    %232 = vmatprep.mubr.f32.mxu0 0.0
    %233 = vmatmul.mubr.f32.gmra.mxu0 %v141
    %v234 = vpop.f32.mrf.mxu0
    %v235 = vadd.f32 %v131, %v234
    %v236 = vpop.f32.mrf.mxu0
    %237 = vmatprep.mubr.f32.mxu0 0.0
    %238 = vmatmul.mubr.f32.gmra.mxu0 %v144
    %v239 = vpop.f32.mrf.mxu0
    %v240 = vadd.f32 %v131, %v239
    %v241 = vpop.f32.mrf.mxu0
    %242 = vmatprep.mubr.f32.mxu0 0.0
    %243 = vmatmul.mubr.f32.gmra.mxu0 %v147
    %v244 = vpop.f32.mrf.mxu0
    %v245 = vadd.f32 %v131, %v244
    %v246 = vpop.f32.mrf.mxu0
    %247 = vmatprep.mubr.f32.mxu0 0.0
    %248 = vmatmul.mubr.f32.gmra.mxu0 %v150
    %v249 = vpop.f32.mrf.mxu0
    %v250 = vadd.f32 %v131, %v249
    %v251 = vpop.f32.mrf.mxu0
    %252 = vmatprep.mubr.f32.mxu0 0.0
    %253 = vmatmul.mubr.f32.gmra.mxu0 %v153
    %v254 = vpop.f32.mrf.mxu0
    %v255 = vadd.f32 %v131, %v254
    %v256 = vpop.f32.mrf.mxu0
    %257 = vmatprep.mubr.f32.mxu0 0.0
    %258 = vmatmul.mubr.f32.gmra.mxu0 %v156
    %v259 = vpop.f32.mrf.mxu0
    %v260 = vadd.f32 %v131, %v259
    %v261 = vpop.f32.mrf.mxu0
    %262 = vdwg.mxu0
    %v263 = vmax.f32 %v225, 0.0
    %v264 = vmax.f32 %v230, 0.0
    %v265 = vmax.f32 %v235, 0.0
    %v266 = vmax.f32 %v240, 0.0
    %v267 = vmax.f32 %v245, 0.0
    %v268 = vmax.f32 %v250, 0.0
    %v269 = vmax.f32 %v255, 0.0
    %v270 = vmax.f32 %v260, 0.0
    %v271 = vld [vmem:[#allocation8] sm:$0xff]
    %v272 = vld [vmem:[#allocation8 + $0x8] sm:$0xff]
    %v273 = vld [vmem:[#allocation8 + $0x10] sm:$0xff]
    %v274 = vld [vmem:[#allocation8 + $0x18] sm:$0xff]
    %v275 = vld [vmem:[#allocation8 + $0x20] sm:$0xff]
    %v276 = vld [vmem:[#allocation8 + $0x28] sm:$0xff]
    %v277 = vld [vmem:[#allocation8 + $0x30] sm:$0xff]
    %v278 = vld [vmem:[#allocation8 + $0x38] sm:$0xff]
    %v279 = vld [vmem:[#allocation8 + $0x40] sm:$0xff]
    %v280 = vld [vmem:[#allocation8 + $0x48] sm:$0xff]
    %v281 = vld [vmem:[#allocation8 + $0x50] sm:$0xff]
    %v282 = vld [vmem:[#allocation8 + $0x58] sm:$0xff]
    %v283 = vld [vmem:[#allocation8 + $0x60] sm:$0xff]
    %v284 = vld [vmem:[#allocation8 + $0x68] sm:$0xff]
    %v285 = vld [vmem:[#allocation8 + $0x70] sm:$0xff]
    %v286 = vld [vmem:[#allocation8 + $0x78] sm:$0xff]
    %v287 = vld [vmem:[%s5] sm:$0x1]
    %v289 = vlaneseq
    %v290 = vshrl.u32 %v289, 7
    %v291 = vsub.s32 0, %v290
    %v292 = vrot.slane %v287, %v291
    %294 = vmatprep.subr.mxu0 0.0
    %295 = vmatpush1.msra.mxu0 %v286
    %296 = vmatprep.subr.mxu0 0.0
    %297 = vmatpush1.msra.mxu0 %v285
    %298 = vmatprep.subr.mxu0 0.0
    %299 = vmatpush1.msra.mxu0 %v284
    %300 = vmatprep.subr.mxu0 0.0
    %301 = vmatpush1.msra.mxu0 %v283
    %302 = vmatprep.subr.mxu0 0.0
    %303 = vmatpush1.msra.mxu0 %v282
    %304 = vmatprep.subr.mxu0 0.0
    %305 = vmatpush1.msra.mxu0 %v281
    %306 = vmatprep.subr.mxu0 0.0
    %307 = vmatpush1.msra.mxu0 %v280
    %308 = vmatprep.subr.mxu0 0.0
    %309 = vmatpush1.msra.mxu0 %v279
    %310 = vmatprep.subr.mxu0 0.0
    %311 = vmatpush1.msra.mxu0 %v278
    %312 = vmatprep.subr.mxu0 0.0
    %313 = vmatpush1.msra.mxu0 %v277
    %314 = vmatprep.subr.mxu0 0.0
    %315 = vmatpush1.msra.mxu0 %v276
    %316 = vmatprep.subr.mxu0 0.0
    %317 = vmatpush1.msra.mxu0 %v275
    %318 = vmatprep.subr.mxu0 0.0
    %319 = vmatpush1.msra.mxu0 %v274
    %320 = vmatprep.subr.mxu0 0.0
    %321 = vmatpush1.msra.mxu0 %v273
    %322 = vmatprep.subr.mxu0 0.0
    %323 = vmatpush1.msra.mxu0 %v272
    %324 = vmatprep.subr.mxu0 0.0
    %325 = vmatpush1.msra.mxu0 %v271
    %326 = vmatprep.subr.mxu0 0.0
    %327 = vmatpush2.msra.mxu0 0.0
    %328 = vmatprep.subr.mxu0 0.0
    %329 = vmatpush2.msra.mxu0 0.0
    %330 = vmatprep.subr.mxu0 0.0
    %331 = vmatpush2.msra.mxu0 0.0
    %332 = vmatprep.subr.mxu0 0.0
    %333 = vmatpush2.msra.mxu0 0.0
    %334 = vmatprep.subr.mxu0 0.0
    %335 = vmatpush2.msra.mxu0 0.0
    %336 = vmatprep.subr.mxu0 0.0
    %337 = vmatpush2.msra.mxu0 0.0
    %338 = vmatprep.subr.mxu0 0.0
    %339 = vmatpush2.msra.mxu0 0.0
    %340 = vmatprep.subr.mxu0 0.0
    %341 = vmatpush2.msra.mxu0 0.0
    %342 = vmatprep.subr.mxu0 0.0
    %343 = vmatpush2.msra.mxu0 0.0
    %344 = vmatprep.subr.mxu0 0.0
    %345 = vmatpush2.msra.mxu0 0.0
    %346 = vmatprep.subr.mxu0 0.0
    %347 = vmatpush2.msra.mxu0 0.0
    %348 = vmatprep.subr.mxu0 0.0
    %349 = vmatpush2.msra.mxu0 0.0
    %350 = vmatprep.subr.mxu0 0.0
    %351 = vmatpush2.msra.mxu0 0.0
    %352 = vmatprep.subr.mxu0 0.0
    %353 = vmatpush2.msra.mxu0 0.0
    %354 = vmatprep.subr.mxu0 0.0
    %355 = vmatpush2.msra.mxu0 0.0
    %356 = vmatprep.subr.mxu0 0.0
    %357 = vmatpush2.msra.mxu0 0.0
    %358 = vmatprep.mubr.f32.mxu0 0.0
    %359 = vmatmul.mubr.f32.gmra.mxu0 %v263
    %v360 = vpop.f32.mrf.mxu0
    %v361 = vadd.f32 %v292, %v360
    %v362 = vpop.f32.mrf.mxu0
    %363 = vmatprep.mubr.f32.mxu0 0.0
    %364 = vmatmul.mubr.f32.gmra.mxu0 %v264
    %v365 = vpop.f32.mrf.mxu0
    %v366 = vadd.f32 %v292, %v365
    %v367 = vpop.f32.mrf.mxu0
    %368 = vmatprep.mubr.f32.mxu0 0.0
    %369 = vmatmul.mubr.f32.gmra.mxu0 %v265
    %v370 = vpop.f32.mrf.mxu0
    %v371 = vadd.f32 %v292, %v370
    %v372 = vpop.f32.mrf.mxu0
    %373 = vmatprep.mubr.f32.mxu0 0.0
    %374 = vmatmul.mubr.f32.gmra.mxu0 %v266
    %v375 = vpop.f32.mrf.mxu0
    %v376 = vadd.f32 %v292, %v375
    %v377 = vpop.f32.mrf.mxu0
    %378 = vmatprep.mubr.f32.mxu0 0.0
    %379 = vmatmul.mubr.f32.gmra.mxu0 %v267
    %v380 = vpop.f32.mrf.mxu0
    %v381 = vadd.f32 %v292, %v380
    %v382 = vpop.f32.mrf.mxu0
    %383 = vmatprep.mubr.f32.mxu0 0.0
    %384 = vmatmul.mubr.f32.gmra.mxu0 %v268
    %v385 = vpop.f32.mrf.mxu0
    %v386 = vadd.f32 %v292, %v385
    %v387 = vpop.f32.mrf.mxu0
    %388 = vmatprep.mubr.f32.mxu0 0.0
    %389 = vmatmul.mubr.f32.gmra.mxu0 %v269
    %v390 = vpop.f32.mrf.mxu0
    %v391 = vadd.f32 %v292, %v390
    %v392 = vpop.f32.mrf.mxu0
    %393 = vmatprep.mubr.f32.mxu0 0.0
    %394 = vmatmul.mubr.f32.gmra.mxu0 %v270
    %v395 = vpop.f32.mrf.mxu0
    %v396 = vadd.f32 %v292, %v395
    %v397 = vpop.f32.mrf.mxu0
    %398 = vdwg.mxu0
    %v399 = vld [vmem:[#allocation10] sm:$0xff]
    %v400 = vld [vmem:[#allocation10 + $0x8] sm:$0xff]
    %v401 = vld [vmem:[#allocation10 + $0x10] sm:$0xff]
    %v402 = vld [vmem:[#allocation10 + $0x18] sm:$0xff]
    %v403 = vld [vmem:[#allocation10 + $0x20] sm:$0xff]
    %v404 = vld [vmem:[#allocation10 + $0x28] sm:$0xff]
    %v405 = vld [vmem:[#allocation10 + $0x30] sm:$0xff]
    %v406 = vld [vmem:[#allocation10 + $0x38] sm:$0xff]
    %v407 = vld [vmem:[#allocation10 + $0x40] sm:$0xff]
    %v408 = vld [vmem:[#allocation10 + $0x48] sm:$0xff]
    %v409 = vld [vmem:[#allocation10 + $0x50] sm:$0xff]
    %v410 = vld [vmem:[#allocation10 + $0x58] sm:$0xff]
    %v411 = vld [vmem:[#allocation10 + $0x60] sm:$0xff]
    %v412 = vld [vmem:[#allocation10 + $0x68] sm:$0xff]
    %v413 = vld [vmem:[#allocation10 + $0x70] sm:$0xff]
    %v414 = vld [vmem:[#allocation10 + $0x78] sm:$0xff]
    %v415 = vld [vmem:[#allocation5] sm:$0xff]
    %416 = vmatprep.subr.mxu0 0.0
    %417 = vmatpush1.msra.mxu0 %v414
    %418 = vmatprep.subr.mxu0 0.0
    %419 = vmatpush1.msra.mxu0 %v413
    %420 = vmatprep.subr.mxu0 0.0
    %421 = vmatpush1.msra.mxu0 %v412
    %422 = vmatprep.subr.mxu0 0.0
    %423 = vmatpush1.msra.mxu0 %v411
    %424 = vmatprep.subr.mxu0 0.0
    %425 = vmatpush1.msra.mxu0 %v410
    %426 = vmatprep.subr.mxu0 0.0
    %427 = vmatpush1.msra.mxu0 %v409
    %428 = vmatprep.subr.mxu0 0.0
    %429 = vmatpush1.msra.mxu0 %v408
    %430 = vmatprep.subr.mxu0 0.0
    %431 = vmatpush1.msra.mxu0 %v407
    %432 = vmatprep.subr.mxu0 0.0
    %433 = vmatpush1.msra.mxu0 %v406
    %434 = vmatprep.subr.mxu0 0.0
    %435 = vmatpush1.msra.mxu0 %v405
    %436 = vmatprep.subr.mxu0 0.0
    %437 = vmatpush1.msra.mxu0 %v404
    %438 = vmatprep.subr.mxu0 0.0
    %439 = vmatpush1.msra.mxu0 %v403
    %440 = vmatprep.subr.mxu0 0.0
    %441 = vmatpush1.msra.mxu0 %v402
    %442 = vmatprep.subr.mxu0 0.0
    %443 = vmatpush1.msra.mxu0 %v401
    %444 = vmatprep.subr.mxu0 0.0
    %445 = vmatpush1.msra.mxu0 %v400
    %446 = vmatprep.subr.mxu0 0.0
    %447 = vmatpush1.msra.mxu0 %v399
    %448 = vmatprep.subr.mxu0 0.0
    %449 = vmatpush2.msra.mxu0 0.0
    %450 = vmatprep.subr.mxu0 0.0
    %451 = vmatpush2.msra.mxu0 0.0
    %452 = vmatprep.subr.mxu0 0.0
    %453 = vmatpush2.msra.mxu0 0.0
    %454 = vmatprep.subr.mxu0 0.0
    %455 = vmatpush2.msra.mxu0 0.0
    %456 = vmatprep.subr.mxu0 0.0
    %457 = vmatpush2.msra.mxu0 0.0
    %458 = vmatprep.subr.mxu0 0.0
    %459 = vmatpush2.msra.mxu0 0.0
    %460 = vmatprep.subr.mxu0 0.0
    %461 = vmatpush2.msra.mxu0 0.0
    %462 = vmatprep.subr.mxu0 0.0
    %463 = vmatpush2.msra.mxu0 0.0
    %464 = vmatprep.subr.mxu0 0.0
    %465 = vmatpush2.msra.mxu0 0.0
    %466 = vmatprep.subr.mxu0 0.0
    %467 = vmatpush2.msra.mxu0 0.0
    %468 = vmatprep.subr.mxu0 0.0
    %469 = vmatpush2.msra.mxu0 0.0
    %470 = vmatprep.subr.mxu0 0.0
    %471 = vmatpush2.msra.mxu0 0.0
    %472 = vmatprep.subr.mxu0 0.0
    %473 = vmatpush2.msra.mxu0 0.0
    %474 = vmatprep.subr.mxu0 0.0
    %475 = vmatpush2.msra.mxu0 0.0
    %476 = vmatprep.subr.mxu0 0.0
    %477 = vmatpush2.msra.mxu0 0.0
    %478 = vmatprep.subr.mxu0 0.0
    %479 = vmatpush2.msra.mxu0 0.0
    %480 = vmatprep.mubr.f32.mxu0 0.0
    %481 = vmatmul.mubr.f32.gmra.mxu0 %v415
    %v482 = vpop.f32.mrf.mxu0
    %v483 = vadd.f32 0.0, %v482
    %v484 = vpop.f32.mrf.mxu0
    %485 = vdwg.mxu0
    %v486 = vadd.f32 %v361, %v483
    %v487 = vtanh.pop %v486
    %488 = vmatprep.subr.mxu0 0.0
    %489 = vmatpush1.msra.mxu0 %v414
    %490 = vmatprep.subr.mxu0 0.0
    %491 = vmatpush1.msra.mxu0 %v413
    %492 = vmatprep.subr.mxu0 0.0
    %493 = vmatpush1.msra.mxu0 %v412
    %494 = vmatprep.subr.mxu0 0.0
    %495 = vmatpush1.msra.mxu0 %v411
    %496 = vmatprep.subr.mxu0 0.0
    %497 = vmatpush1.msra.mxu0 %v410
    %498 = vmatprep.subr.mxu0 0.0
    %499 = vmatpush1.msra.mxu0 %v409
    %500 = vmatprep.subr.mxu0 0.0
    %501 = vmatpush1.msra.mxu0 %v408
    %502 = vmatprep.subr.mxu0 0.0
    %503 = vmatpush1.msra.mxu0 %v407
    %504 = vmatprep.subr.mxu0 0.0
    %505 = vmatpush1.msra.mxu0 %v406
    %506 = vmatprep.subr.mxu0 0.0
    %507 = vmatpush1.msra.mxu0 %v405
    %508 = vmatprep.subr.mxu0 0.0
    %509 = vmatpush1.msra.mxu0 %v404
    %510 = vmatprep.subr.mxu0 0.0
    %511 = vmatpush1.msra.mxu0 %v403
    %512 = vmatprep.subr.mxu0 0.0
    %513 = vmatpush1.msra.mxu0 %v402
    %514 = vmatprep.subr.mxu0 0.0
    %515 = vmatpush1.msra.mxu0 %v401
    %516 = vmatprep.subr.mxu0 0.0
    %517 = vmatpush1.msra.mxu0 %v400
    %518 = vmatprep.subr.mxu0 0.0
    %519 = vmatpush1.msra.mxu0 %v399
    %520 = vmatprep.subr.mxu0 0.0
    %521 = vmatpush2.msra.mxu0 0.0
    %522 = vmatprep.subr.mxu0 0.0
    %523 = vmatpush2.msra.mxu0 0.0
    %524 = vmatprep.subr.mxu0 0.0
    %525 = vmatpush2.msra.mxu0 0.0
    %526 = vmatprep.subr.mxu0 0.0
    %527 = vmatpush2.msra.mxu0 0.0
    %528 = vmatprep.subr.mxu0 0.0
    %529 = vmatpush2.msra.mxu0 0.0
    %530 = vmatprep.subr.mxu0 0.0
    %531 = vmatpush2.msra.mxu0 0.0
    %532 = vmatprep.subr.mxu0 0.0
    %533 = vmatpush2.msra.mxu0 0.0
    %534 = vmatprep.subr.mxu0 0.0
    %535 = vmatpush2.msra.mxu0 0.0
    %536 = vmatprep.subr.mxu0 0.0
    %537 = vmatpush2.msra.mxu0 0.0
    %538 = vmatprep.subr.mxu0 0.0
    %539 = vmatpush2.msra.mxu0 0.0
    %540 = vmatprep.subr.mxu0 0.0
    %541 = vmatpush2.msra.mxu0 0.0
    %542 = vmatprep.subr.mxu0 0.0
    %543 = vmatpush2.msra.mxu0 0.0
    %544 = vmatprep.subr.mxu0 0.0
    %545 = vmatpush2.msra.mxu0 0.0
    %546 = vmatprep.subr.mxu0 0.0
    %547 = vmatpush2.msra.mxu0 0.0
    %548 = vmatprep.subr.mxu0 0.0
    %549 = vmatpush2.msra.mxu0 0.0
    %550 = vmatprep.subr.mxu0 0.0
    %551 = vmatpush2.msra.mxu0 0.0
    %552 = vmatprep.mubr.f32.mxu0 0.0
    %553 = vmatmul.mubr.f32.gmra.mxu0 %v487
    %v554 = vpop.f32.mrf.mxu0
    %v555 = vadd.f32 0.0, %v554
    %v556 = vpop.f32.mrf.mxu0
    %557 = vdwg.mxu0
    %v558 = vadd.f32 %v366, %v555
    %v559 = vtanh.pop %v558
    %560 = vmatprep.subr.mxu0 0.0
    %561 = vmatpush1.msra.mxu0 %v414
    %562 = vmatprep.subr.mxu0 0.0
    %563 = vmatpush1.msra.mxu0 %v413
    %564 = vmatprep.subr.mxu0 0.0
    %565 = vmatpush1.msra.mxu0 %v412
    %566 = vmatprep.subr.mxu0 0.0
    %567 = vmatpush1.msra.mxu0 %v411
    %568 = vmatprep.subr.mxu0 0.0
    %569 = vmatpush1.msra.mxu0 %v410
    %570 = vmatprep.subr.mxu0 0.0
    %571 = vmatpush1.msra.mxu0 %v409
    %572 = vmatprep.subr.mxu0 0.0
    %573 = vmatpush1.msra.mxu0 %v408
    %574 = vmatprep.subr.mxu0 0.0
    %575 = vmatpush1.msra.mxu0 %v407
    %576 = vmatprep.subr.mxu0 0.0
    %577 = vmatpush1.msra.mxu0 %v406
    %578 = vmatprep.subr.mxu0 0.0
    %579 = vmatpush1.msra.mxu0 %v405
    %580 = vmatprep.subr.mxu0 0.0
    %581 = vmatpush1.msra.mxu0 %v404
    %582 = vmatprep.subr.mxu0 0.0
    %583 = vmatpush1.msra.mxu0 %v403
    %584 = vmatprep.subr.mxu0 0.0
    %585 = vmatpush1.msra.mxu0 %v402
    %586 = vmatprep.subr.mxu0 0.0
    %587 = vmatpush1.msra.mxu0 %v401
    %588 = vmatprep.subr.mxu0 0.0
    %589 = vmatpush1.msra.mxu0 %v400
    %590 = vmatprep.subr.mxu0 0.0
    %591 = vmatpush1.msra.mxu0 %v399
    %592 = vmatprep.subr.mxu0 0.0
    %593 = vmatpush2.msra.mxu0 0.0
    %594 = vmatprep.subr.mxu0 0.0
    %595 = vmatpush2.msra.mxu0 0.0
    %596 = vmatprep.subr.mxu0 0.0
    %597 = vmatpush2.msra.mxu0 0.0
    %598 = vmatprep.subr.mxu0 0.0
    %599 = vmatpush2.msra.mxu0 0.0
    %600 = vmatprep.subr.mxu0 0.0
    %601 = vmatpush2.msra.mxu0 0.0
    %602 = vmatprep.subr.mxu0 0.0
    %603 = vmatpush2.msra.mxu0 0.0
    %604 = vmatprep.subr.mxu0 0.0
    %605 = vmatpush2.msra.mxu0 0.0
    %606 = vmatprep.subr.mxu0 0.0
    %607 = vmatpush2.msra.mxu0 0.0
    %608 = vmatprep.subr.mxu0 0.0
    %609 = vmatpush2.msra.mxu0 0.0
    %610 = vmatprep.subr.mxu0 0.0
    %611 = vmatpush2.msra.mxu0 0.0
    %612 = vmatprep.subr.mxu0 0.0
    %613 = vmatpush2.msra.mxu0 0.0
    %614 = vmatprep.subr.mxu0 0.0
    %615 = vmatpush2.msra.mxu0 0.0
    %616 = vmatprep.subr.mxu0 0.0
    %617 = vmatpush2.msra.mxu0 0.0
    %618 = vmatprep.subr.mxu0 0.0
    %619 = vmatpush2.msra.mxu0 0.0
    %620 = vmatprep.subr.mxu0 0.0
    %621 = vmatpush2.msra.mxu0 0.0
    %622 = vmatprep.subr.mxu0 0.0
    %623 = vmatpush2.msra.mxu0 0.0
    %624 = vmatprep.mubr.f32.mxu0 0.0
    %625 = vmatmul.mubr.f32.gmra.mxu0 %v559
    %v626 = vpop.f32.mrf.mxu0
    %v627 = vadd.f32 0.0, %v626
    %v628 = vpop.f32.mrf.mxu0
    %629 = vdwg.mxu0
    %v630 = vadd.f32 %v371, %v627
    %v631 = vtanh.pop %v630
    %632 = vmatprep.subr.mxu0 0.0
    %633 = vmatpush1.msra.mxu0 %v414
    %634 = vmatprep.subr.mxu0 0.0
    %635 = vmatpush1.msra.mxu0 %v413
    %636 = vmatprep.subr.mxu0 0.0
    %637 = vmatpush1.msra.mxu0 %v412
    %638 = vmatprep.subr.mxu0 0.0
    %639 = vmatpush1.msra.mxu0 %v411
    %640 = vmatprep.subr.mxu0 0.0
    %641 = vmatpush1.msra.mxu0 %v410
    %642 = vmatprep.subr.mxu0 0.0
    %643 = vmatpush1.msra.mxu0 %v409
    %644 = vmatprep.subr.mxu0 0.0
    %645 = vmatpush1.msra.mxu0 %v408
    %646 = vmatprep.subr.mxu0 0.0
    %647 = vmatpush1.msra.mxu0 %v407
    %648 = vmatprep.subr.mxu0 0.0
    %649 = vmatpush1.msra.mxu0 %v406
    %650 = vmatprep.subr.mxu0 0.0
    %651 = vmatpush1.msra.mxu0 %v405
    %652 = vmatprep.subr.mxu0 0.0
    %653 = vmatpush1.msra.mxu0 %v404
    %654 = vmatprep.subr.mxu0 0.0
    %655 = vmatpush1.msra.mxu0 %v403
    %656 = vmatprep.subr.mxu0 0.0
    %657 = vmatpush1.msra.mxu0 %v402
    %658 = vmatprep.subr.mxu0 0.0
    %659 = vmatpush1.msra.mxu0 %v401
    %660 = vmatprep.subr.mxu0 0.0
    %661 = vmatpush1.msra.mxu0 %v400
    %662 = vmatprep.subr.mxu0 0.0
    %663 = vmatpush1.msra.mxu0 %v399
    %664 = vmatprep.subr.mxu0 0.0
    %665 = vmatpush2.msra.mxu0 0.0
    %666 = vmatprep.subr.mxu0 0.0
    %667 = vmatpush2.msra.mxu0 0.0
    %668 = vmatprep.subr.mxu0 0.0
    %669 = vmatpush2.msra.mxu0 0.0
    %670 = vmatprep.subr.mxu0 0.0
    %671 = vmatpush2.msra.mxu0 0.0
    %672 = vmatprep.subr.mxu0 0.0
    %673 = vmatpush2.msra.mxu0 0.0
    %674 = vmatprep.subr.mxu0 0.0
    %675 = vmatpush2.msra.mxu0 0.0
    %676 = vmatprep.subr.mxu0 0.0
    %677 = vmatpush2.msra.mxu0 0.0
    %678 = vmatprep.subr.mxu0 0.0
    %679 = vmatpush2.msra.mxu0 0.0
    %680 = vmatprep.subr.mxu0 0.0
    %681 = vmatpush2.msra.mxu0 0.0
    %682 = vmatprep.subr.mxu0 0.0
    %683 = vmatpush2.msra.mxu0 0.0
    %684 = vmatprep.subr.mxu0 0.0
    %685 = vmatpush2.msra.mxu0 0.0
    %686 = vmatprep.subr.mxu0 0.0
    %687 = vmatpush2.msra.mxu0 0.0
    %688 = vmatprep.subr.mxu0 0.0
    %689 = vmatpush2.msra.mxu0 0.0
    %690 = vmatprep.subr.mxu0 0.0
    %691 = vmatpush2.msra.mxu0 0.0
    %692 = vmatprep.subr.mxu0 0.0
    %693 = vmatpush2.msra.mxu0 0.0
    %694 = vmatprep.subr.mxu0 0.0
    %695 = vmatpush2.msra.mxu0 0.0
    %696 = vmatprep.mubr.f32.mxu0 0.0
    %697 = vmatmul.mubr.f32.gmra.mxu0 %v631
    %v698 = vpop.f32.mrf.mxu0
    %v699 = vadd.f32 0.0, %v698
    %v700 = vpop.f32.mrf.mxu0
    %701 = vdwg.mxu0
    %v702 = vadd.f32 %v376, %v699
    %v703 = vtanh.pop %v702
    %704 = vmatprep.subr.mxu0 0.0
    %705 = vmatpush1.msra.mxu0 %v414
    %706 = vmatprep.subr.mxu0 0.0
    %707 = vmatpush1.msra.mxu0 %v413
    %708 = vmatprep.subr.mxu0 0.0
    %709 = vmatpush1.msra.mxu0 %v412
    %710 = vmatprep.subr.mxu0 0.0
    %711 = vmatpush1.msra.mxu0 %v411
    %712 = vmatprep.subr.mxu0 0.0
    %713 = vmatpush1.msra.mxu0 %v410
    %714 = vmatprep.subr.mxu0 0.0
    %715 = vmatpush1.msra.mxu0 %v409
    %716 = vmatprep.subr.mxu0 0.0
    %717 = vmatpush1.msra.mxu0 %v408
    %718 = vmatprep.subr.mxu0 0.0
    %719 = vmatpush1.msra.mxu0 %v407
    %720 = vmatprep.subr.mxu0 0.0
    %721 = vmatpush1.msra.mxu0 %v406
    %722 = vmatprep.subr.mxu0 0.0
    %723 = vmatpush1.msra.mxu0 %v405
    %724 = vmatprep.subr.mxu0 0.0
    %725 = vmatpush1.msra.mxu0 %v404
    %726 = vmatprep.subr.mxu0 0.0
    %727 = vmatpush1.msra.mxu0 %v403
    %728 = vmatprep.subr.mxu0 0.0
    %729 = vmatpush1.msra.mxu0 %v402
    %730 = vmatprep.subr.mxu0 0.0
    %731 = vmatpush1.msra.mxu0 %v401
    %732 = vmatprep.subr.mxu0 0.0
    %733 = vmatpush1.msra.mxu0 %v400
    %734 = vmatprep.subr.mxu0 0.0
    %735 = vmatpush1.msra.mxu0 %v399
    %736 = vmatprep.subr.mxu0 0.0
    %737 = vmatpush2.msra.mxu0 0.0
    %738 = vmatprep.subr.mxu0 0.0
    %739 = vmatpush2.msra.mxu0 0.0
    %740 = vmatprep.subr.mxu0 0.0
    %741 = vmatpush2.msra.mxu0 0.0
    %742 = vmatprep.subr.mxu0 0.0
    %743 = vmatpush2.msra.mxu0 0.0
    %744 = vmatprep.subr.mxu0 0.0
    %745 = vmatpush2.msra.mxu0 0.0
    %746 = vmatprep.subr.mxu0 0.0
    %747 = vmatpush2.msra.mxu0 0.0
    %748 = vmatprep.subr.mxu0 0.0
    %749 = vmatpush2.msra.mxu0 0.0
    %750 = vmatprep.subr.mxu0 0.0
    %751 = vmatpush2.msra.mxu0 0.0
    %752 = vmatprep.subr.mxu0 0.0
    %753 = vmatpush2.msra.mxu0 0.0
    %754 = vmatprep.subr.mxu0 0.0
    %755 = vmatpush2.msra.mxu0 0.0
    %756 = vmatprep.subr.mxu0 0.0
    %757 = vmatpush2.msra.mxu0 0.0
    %758 = vmatprep.subr.mxu0 0.0
    %759 = vmatpush2.msra.mxu0 0.0
    %760 = vmatprep.subr.mxu0 0.0
    %761 = vmatpush2.msra.mxu0 0.0
    %762 = vmatprep.subr.mxu0 0.0
    %763 = vmatpush2.msra.mxu0 0.0
    %764 = vmatprep.subr.mxu0 0.0
    %765 = vmatpush2.msra.mxu0 0.0
    %766 = vmatprep.subr.mxu0 0.0
    %767 = vmatpush2.msra.mxu0 0.0
    %768 = vmatprep.mubr.f32.mxu0 0.0
    %769 = vmatmul.mubr.f32.gmra.mxu0 %v703
    %v770 = vpop.f32.mrf.mxu0
    %v771 = vadd.f32 0.0, %v770
    %v772 = vpop.f32.mrf.mxu0
    %773 = vdwg.mxu0
    %v774 = vadd.f32 %v381, %v771
    %v775 = vtanh.pop %v774
    %776 = vmatprep.subr.mxu0 0.0
    %777 = vmatpush1.msra.mxu0 %v414
    %778 = vmatprep.subr.mxu0 0.0
    %779 = vmatpush1.msra.mxu0 %v413
    %780 = vmatprep.subr.mxu0 0.0
    %781 = vmatpush1.msra.mxu0 %v412
    %782 = vmatprep.subr.mxu0 0.0
    %783 = vmatpush1.msra.mxu0 %v411
    %784 = vmatprep.subr.mxu0 0.0
    %785 = vmatpush1.msra.mxu0 %v410
    %786 = vmatprep.subr.mxu0 0.0
    %787 = vmatpush1.msra.mxu0 %v409
    %788 = vmatprep.subr.mxu0 0.0
    %789 = vmatpush1.msra.mxu0 %v408
    %790 = vmatprep.subr.mxu0 0.0
    %791 = vmatpush1.msra.mxu0 %v407
    %792 = vmatprep.subr.mxu0 0.0
    %793 = vmatpush1.msra.mxu0 %v406
    %794 = vmatprep.subr.mxu0 0.0
    %795 = vmatpush1.msra.mxu0 %v405
    %796 = vmatprep.subr.mxu0 0.0
    %797 = vmatpush1.msra.mxu0 %v404
    %798 = vmatprep.subr.mxu0 0.0
    %799 = vmatpush1.msra.mxu0 %v403
    %800 = vmatprep.subr.mxu0 0.0
    %801 = vmatpush1.msra.mxu0 %v402
    %802 = vmatprep.subr.mxu0 0.0
    %803 = vmatpush1.msra.mxu0 %v401
    %804 = vmatprep.subr.mxu0 0.0
    %805 = vmatpush1.msra.mxu0 %v400
    %806 = vmatprep.subr.mxu0 0.0
    %807 = vmatpush1.msra.mxu0 %v399
    %808 = vmatprep.subr.mxu0 0.0
    %809 = vmatpush2.msra.mxu0 0.0
    %810 = vmatprep.subr.mxu0 0.0
    %811 = vmatpush2.msra.mxu0 0.0
    %812 = vmatprep.subr.mxu0 0.0
    %813 = vmatpush2.msra.mxu0 0.0
    %814 = vmatprep.subr.mxu0 0.0
    %815 = vmatpush2.msra.mxu0 0.0
    %816 = vmatprep.subr.mxu0 0.0
    %817 = vmatpush2.msra.mxu0 0.0
    %818 = vmatprep.subr.mxu0 0.0
    %819 = vmatpush2.msra.mxu0 0.0
    %820 = vmatprep.subr.mxu0 0.0
    %821 = vmatpush2.msra.mxu0 0.0
    %822 = vmatprep.subr.mxu0 0.0
    %823 = vmatpush2.msra.mxu0 0.0
    %824 = vmatprep.subr.mxu0 0.0
    %825 = vmatpush2.msra.mxu0 0.0
    %826 = vmatprep.subr.mxu0 0.0
    %827 = vmatpush2.msra.mxu0 0.0
    %828 = vmatprep.subr.mxu0 0.0
    %829 = vmatpush2.msra.mxu0 0.0
    %830 = vmatprep.subr.mxu0 0.0
    %831 = vmatpush2.msra.mxu0 0.0
    %832 = vmatprep.subr.mxu0 0.0
    %833 = vmatpush2.msra.mxu0 0.0
    %834 = vmatprep.subr.mxu0 0.0
    %835 = vmatpush2.msra.mxu0 0.0
    %836 = vmatprep.subr.mxu0 0.0
    %837 = vmatpush2.msra.mxu0 0.0
    %838 = vmatprep.subr.mxu0 0.0
    %839 = vmatpush2.msra.mxu0 0.0
    %840 = vmatprep.mubr.f32.mxu0 0.0
    %841 = vmatmul.mubr.f32.gmra.mxu0 %v775
    %v842 = vpop.f32.mrf.mxu0
    %v843 = vadd.f32 0.0, %v842
    %v844 = vpop.f32.mrf.mxu0
    %845 = vdwg.mxu0
    %v846 = vadd.f32 %v386, %v843
    %v847 = vtanh.pop %v846
    %848 = vmatprep.subr.mxu0 0.0
    %849 = vmatpush1.msra.mxu0 %v414
    %850 = vmatprep.subr.mxu0 0.0
    %851 = vmatpush1.msra.mxu0 %v413
    %852 = vmatprep.subr.mxu0 0.0
    %853 = vmatpush1.msra.mxu0 %v412
    %854 = vmatprep.subr.mxu0 0.0
    %855 = vmatpush1.msra.mxu0 %v411
    %856 = vmatprep.subr.mxu0 0.0
    %857 = vmatpush1.msra.mxu0 %v410
    %858 = vmatprep.subr.mxu0 0.0
    %859 = vmatpush1.msra.mxu0 %v409
    %860 = vmatprep.subr.mxu0 0.0
    %861 = vmatpush1.msra.mxu0 %v408
    %862 = vmatprep.subr.mxu0 0.0
    %863 = vmatpush1.msra.mxu0 %v407
    %864 = vmatprep.subr.mxu0 0.0
    %865 = vmatpush1.msra.mxu0 %v406
    %866 = vmatprep.subr.mxu0 0.0
    %867 = vmatpush1.msra.mxu0 %v405
    %868 = vmatprep.subr.mxu0 0.0
    %869 = vmatpush1.msra.mxu0 %v404
    %870 = vmatprep.subr.mxu0 0.0
    %871 = vmatpush1.msra.mxu0 %v403
    %872 = vmatprep.subr.mxu0 0.0
    %873 = vmatpush1.msra.mxu0 %v402
    %874 = vmatprep.subr.mxu0 0.0
    %875 = vmatpush1.msra.mxu0 %v401
    %876 = vmatprep.subr.mxu0 0.0
    %877 = vmatpush1.msra.mxu0 %v400
    %878 = vmatprep.subr.mxu0 0.0
    %879 = vmatpush1.msra.mxu0 %v399
    %880 = vmatprep.subr.mxu0 0.0
    %881 = vmatpush2.msra.mxu0 0.0
    %882 = vmatprep.subr.mxu0 0.0
    %883 = vmatpush2.msra.mxu0 0.0
    %884 = vmatprep.subr.mxu0 0.0
    %885 = vmatpush2.msra.mxu0 0.0
    %886 = vmatprep.subr.mxu0 0.0
    %887 = vmatpush2.msra.mxu0 0.0
    %888 = vmatprep.subr.mxu0 0.0
    %889 = vmatpush2.msra.mxu0 0.0
    %890 = vmatprep.subr.mxu0 0.0
    %891 = vmatpush2.msra.mxu0 0.0
    %892 = vmatprep.subr.mxu0 0.0
    %893 = vmatpush2.msra.mxu0 0.0
    %894 = vmatprep.subr.mxu0 0.0
    %895 = vmatpush2.msra.mxu0 0.0
    %896 = vmatprep.subr.mxu0 0.0
    %897 = vmatpush2.msra.mxu0 0.0
    %898 = vmatprep.subr.mxu0 0.0
    %899 = vmatpush2.msra.mxu0 0.0
    %900 = vmatprep.subr.mxu0 0.0
    %901 = vmatpush2.msra.mxu0 0.0
    %902 = vmatprep.subr.mxu0 0.0
    %903 = vmatpush2.msra.mxu0 0.0
    %904 = vmatprep.subr.mxu0 0.0
    %905 = vmatpush2.msra.mxu0 0.0
    %906 = vmatprep.subr.mxu0 0.0
    %907 = vmatpush2.msra.mxu0 0.0
    %908 = vmatprep.subr.mxu0 0.0
    %909 = vmatpush2.msra.mxu0 0.0
    %910 = vmatprep.subr.mxu0 0.0
    %911 = vmatpush2.msra.mxu0 0.0
    %912 = vmatprep.mubr.f32.mxu0 0.0
    %913 = vmatmul.mubr.f32.gmra.mxu0 %v847
    %v914 = vpop.f32.mrf.mxu0
    %v915 = vadd.f32 0.0, %v914
    %v916 = vpop.f32.mrf.mxu0
    %917 = vdwg.mxu0
    %v918 = vadd.f32 %v391, %v915
    %v919 = vtanh.pop %v918
    %920 = vmatprep.subr.mxu0 0.0
    %921 = vmatpush1.msra.mxu0 %v414
    %922 = vmatprep.subr.mxu0 0.0
    %923 = vmatpush1.msra.mxu0 %v413
    %924 = vmatprep.subr.mxu0 0.0
    %925 = vmatpush1.msra.mxu0 %v412
    %926 = vmatprep.subr.mxu0 0.0
    %927 = vmatpush1.msra.mxu0 %v411
    %928 = vmatprep.subr.mxu0 0.0
    %929 = vmatpush1.msra.mxu0 %v410
    %930 = vmatprep.subr.mxu0 0.0
    %931 = vmatpush1.msra.mxu0 %v409
    %932 = vmatprep.subr.mxu0 0.0
    %933 = vmatpush1.msra.mxu0 %v408
    %934 = vmatprep.subr.mxu0 0.0
    %935 = vmatpush1.msra.mxu0 %v407
    %936 = vmatprep.subr.mxu0 0.0
    %937 = vmatpush1.msra.mxu0 %v406
    %938 = vmatprep.subr.mxu0 0.0
    %939 = vmatpush1.msra.mxu0 %v405
    %940 = vmatprep.subr.mxu0 0.0
    %941 = vmatpush1.msra.mxu0 %v404
    %942 = vmatprep.subr.mxu0 0.0
    %943 = vmatpush1.msra.mxu0 %v403
    %944 = vmatprep.subr.mxu0 0.0
    %945 = vmatpush1.msra.mxu0 %v402
    %946 = vmatprep.subr.mxu0 0.0
    %947 = vmatpush1.msra.mxu0 %v401
    %948 = vmatprep.subr.mxu0 0.0
    %949 = vmatpush1.msra.mxu0 %v400
    %950 = vmatprep.subr.mxu0 0.0
    %951 = vmatpush1.msra.mxu0 %v399
    %952 = vmatprep.subr.mxu0 0.0
    %953 = vmatpush2.msra.mxu0 0.0
    %954 = vmatprep.subr.mxu0 0.0
    %955 = vmatpush2.msra.mxu0 0.0
    %956 = vmatprep.subr.mxu0 0.0
    %957 = vmatpush2.msra.mxu0 0.0
    %958 = vmatprep.subr.mxu0 0.0
    %959 = vmatpush2.msra.mxu0 0.0
    %960 = vmatprep.subr.mxu0 0.0
    %961 = vmatpush2.msra.mxu0 0.0
    %962 = vmatprep.subr.mxu0 0.0
    %963 = vmatpush2.msra.mxu0 0.0
    %964 = vmatprep.subr.mxu0 0.0
    %965 = vmatpush2.msra.mxu0 0.0
    %966 = vmatprep.subr.mxu0 0.0
    %967 = vmatpush2.msra.mxu0 0.0
    %968 = vmatprep.subr.mxu0 0.0
    %969 = vmatpush2.msra.mxu0 0.0
    %970 = vmatprep.subr.mxu0 0.0
    %971 = vmatpush2.msra.mxu0 0.0
    %972 = vmatprep.subr.mxu0 0.0
    %973 = vmatpush2.msra.mxu0 0.0
    %974 = vmatprep.subr.mxu0 0.0
    %975 = vmatpush2.msra.mxu0 0.0
    %976 = vmatprep.subr.mxu0 0.0
    %977 = vmatpush2.msra.mxu0 0.0
    %978 = vmatprep.subr.mxu0 0.0
    %979 = vmatpush2.msra.mxu0 0.0
    %980 = vmatprep.subr.mxu0 0.0
    %981 = vmatpush2.msra.mxu0 0.0
    %982 = vmatprep.subr.mxu0 0.0
    %983 = vmatpush2.msra.mxu0 0.0
    %984 = vmatprep.mubr.f32.mxu0 0.0
    %985 = vmatmul.mubr.f32.gmra.mxu0 %v919
    %v986 = vpop.f32.mrf.mxu0
    %v987 = vadd.f32 0.0, %v986
    %v988 = vpop.f32.mrf.mxu0
    %989 = vdwg.mxu0
    %v990 = vadd.f32 %v396, %v987
    %v991 = vtanh.pop %v990
    %v992 = vld [vmem:[#allocation11] sm:$0xff]
    %v993 = vld [vmem:[#allocation11 + $0x8] sm:$0xff]
    %v994 = vld [vmem:[#allocation11 + $0x10] sm:$0xff]
    %v995 = vld [vmem:[#allocation11 + $0x18] sm:$0xff]
    %v996 = vld [vmem:[#allocation11 + $0x20] sm:$0xff]
    %v997 = vld [vmem:[#allocation11 + $0x28] sm:$0xff]
    %v998 = vld [vmem:[#allocation11 + $0x30] sm:$0xff]
    %v999 = vld [vmem:[#allocation11 + $0x38] sm:$0xff]
    %v1000 = vld [vmem:[#allocation11 + $0x40] sm:$0xff]
    %v1001 = vld [vmem:[#allocation11 + $0x48] sm:$0xff]
    %v1002 = vld [vmem:[#allocation11 + $0x50] sm:$0xff]
    %v1003 = vld [vmem:[#allocation11 + $0x58] sm:$0xff]
    %v1004 = vld [vmem:[#allocation11 + $0x60] sm:$0xff]
    %v1005 = vld [vmem:[#allocation11 + $0x68] sm:$0xff]
    %v1006 = vld [vmem:[#allocation11 + $0x70] sm:$0xff]
    %v1007 = vld [vmem:[#allocation11 + $0x78] sm:$0xff]
    %v1008 = vld [vmem:[%s8] sm:$0x1]
    %v1010 = vlaneseq
    %v1011 = vshrl.u32 %v1010, 7
    %v1012 = vsub.s32 0, %v1011
    %v1013 = vrot.slane %v1008, %v1012
    %1015 = vmatprep.subr.mxu0 0.0
    %1016 = vmatpush1.msra.mxu0 %v1007
    %1017 = vmatprep.subr.mxu0 0.0
    %1018 = vmatpush1.msra.mxu0 %v1006
    %1019 = vmatprep.subr.mxu0 0.0
    %1020 = vmatpush1.msra.mxu0 %v1005
    %1021 = vmatprep.subr.mxu0 0.0
    %1022 = vmatpush1.msra.mxu0 %v1004
    %1023 = vmatprep.subr.mxu0 0.0
    %1024 = vmatpush1.msra.mxu0 %v1003
    %1025 = vmatprep.subr.mxu0 0.0
    %1026 = vmatpush1.msra.mxu0 %v1002
    %1027 = vmatprep.subr.mxu0 0.0
    %1028 = vmatpush1.msra.mxu0 %v1001
    %1029 = vmatprep.subr.mxu0 0.0
    %1030 = vmatpush1.msra.mxu0 %v1000
    %1031 = vmatprep.subr.mxu0 0.0
    %1032 = vmatpush1.msra.mxu0 %v999
    %1033 = vmatprep.subr.mxu0 0.0
    %1034 = vmatpush1.msra.mxu0 %v998
    %1035 = vmatprep.subr.mxu0 0.0
    %1036 = vmatpush1.msra.mxu0 %v997
    %1037 = vmatprep.subr.mxu0 0.0
    %1038 = vmatpush1.msra.mxu0 %v996
    %1039 = vmatprep.subr.mxu0 0.0
    %1040 = vmatpush1.msra.mxu0 %v995
    %1041 = vmatprep.subr.mxu0 0.0
    %1042 = vmatpush1.msra.mxu0 %v994
    %1043 = vmatprep.subr.mxu0 0.0
    %1044 = vmatpush1.msra.mxu0 %v993
    %1045 = vmatprep.subr.mxu0 0.0
    %1046 = vmatpush1.msra.mxu0 %v992
    %1047 = vmatprep.subr.mxu0 0.0
    %1048 = vmatpush2.msra.mxu0 0.0
    %1049 = vmatprep.subr.mxu0 0.0
    %1050 = vmatpush2.msra.mxu0 0.0
    %1051 = vmatprep.subr.mxu0 0.0
    %1052 = vmatpush2.msra.mxu0 0.0
    %1053 = vmatprep.subr.mxu0 0.0
    %1054 = vmatpush2.msra.mxu0 0.0
    %1055 = vmatprep.subr.mxu0 0.0
    %1056 = vmatpush2.msra.mxu0 0.0
    %1057 = vmatprep.subr.mxu0 0.0
    %1058 = vmatpush2.msra.mxu0 0.0
    %1059 = vmatprep.subr.mxu0 0.0
    %1060 = vmatpush2.msra.mxu0 0.0
    %1061 = vmatprep.subr.mxu0 0.0
    %1062 = vmatpush2.msra.mxu0 0.0
    %1063 = vmatprep.subr.mxu0 0.0
    %1064 = vmatpush2.msra.mxu0 0.0
    %1065 = vmatprep.subr.mxu0 0.0
    %1066 = vmatpush2.msra.mxu0 0.0
    %1067 = vmatprep.subr.mxu0 0.0
    %1068 = vmatpush2.msra.mxu0 0.0
    %1069 = vmatprep.subr.mxu0 0.0
    %1070 = vmatpush2.msra.mxu0 0.0
    %1071 = vmatprep.subr.mxu0 0.0
    %1072 = vmatpush2.msra.mxu0 0.0
    %1073 = vmatprep.subr.mxu0 0.0
    %1074 = vmatpush2.msra.mxu0 0.0
    %1075 = vmatprep.subr.mxu0 0.0
    %1076 = vmatpush2.msra.mxu0 0.0
    %1077 = vmatprep.subr.mxu0 0.0
    %1078 = vmatpush2.msra.mxu0 0.0
    %1079 = vmatprep.mubr.f32.mxu0 0.0
    %1080 = vmatmul.mubr.f32.gmra.mxu0 %v991
    %v1081 = vpop.f32.mrf.mxu0
    %v1082 = vadd.f32 %v1013, %v1081
    %v1083 = vpop.f32.mrf.mxu0
    %1084 = vdwg.mxu0
    %1085 = vst [vmem:[#allocation13] sm:$0xff] %v1082
    %1086 = vst [vmem:[#allocation14] sm:$0xff] %v991
    // Predicated region
    $region62: #{tpu_custom_call.1} parent=1 // pred_check
      _
    $region63: #{tpu_custom_call.1} parent=1 // pred_check_branch
      %1088 = sbr.rel (0) target = $region65
    $region64: #{tpu_custom_call.1} parent=1 // pred_region
      %s1090 = ssub.s32 128, 128
      %1091 = vsyncadd [#allocation4], %s1090
      %s1093 = sshll.u32 [#allocation13], 4
      %s1094 = int_to_ptr.vmem [resolvable:$true] %s1093
      %1096 = dma.vmem_to_hbm [thread:$0]  %s1094, 128, %s9, [#allocation4]
    $region65: #{tpu_custom_call.1} parent=1 // pred_fallthru
      _
    // Predicated region
    $region66: #{tpu_custom_call.1} parent=1 // pred_check
      _
    $region67: #{tpu_custom_call.1} parent=1 // pred_check_branch
      %1098 = sbr.rel (0) target = $region69
    $region68: #{tpu_custom_call.1} parent=1 // pred_region
      %s1100 = ssub.s32 128, 128
      %1101 = vsyncadd [#allocation15], %s1100
      %s1103 = sshll.u32 [#allocation14], 4
      %s1104 = int_to_ptr.vmem [resolvable:$true] %s1103
      %1106 = dma.vmem_to_hbm [thread:$0]  %s1104, 128, %s10, [#allocation15]
    $region69: #{tpu_custom_call.1} parent=1 // pred_fallthru
      _
    // Predicated region
    $region70: #{tpu_custom_call.1} parent=1 // pred_check
      _
    $region71: #{tpu_custom_call.1} parent=1 // pred_check_branch
      %1108 = sbr.rel (0) target = $region73
    $region72: #{tpu_custom_call.1} parent=1 // pred_region
      %1109 = dma.done [#allocation4], 128
    $region73: #{tpu_custom_call.1} parent=1 // pred_fallthru
      _
    // Predicated region
    $region74: #{tpu_custom_call.1} parent=1 // pred_check
      _
    $region75: #{tpu_custom_call.1} parent=1 // pred_check_branch
      %1111 = sbr.rel (0) target = $region77
    $region76: #{tpu_custom_call.1} parent=1 // pred_region
      %1112 = dma.done [#allocation15], 128
    $region77: #{tpu_custom_call.1} parent=1 // pred_fallthru
      _
    %1113 = vsyncpa [#allocation3], 1
    %1114 = vsyncpa [#allocation6], 1
    %1115 = vsyncpa [#allocation9], 1
    %1116 = vsyncpa [#allocation12], 1
    %1117 = vsyncpa [#allocation4], 1
    %1118 = vsyncpa [#allocation15], 1

</llo_original>
